<compile_context>
chip_gen: v7x
topology: tpu7x:2x2x1
jax: 0.10.0
libtpu: 0.0.40
codegen_flags: <defaults>
</compile_context>

<pallas_src>
import functools

import jax
import jax.numpy as jnp
from jax.experimental import pallas as pl
from jax.experimental.pallas import tpu as pltpu


def _round_up(a, m):
    return (a + m - 1) // m * m


def _choose_tiles(B, N):
    """Pick (Bt, B_pad, Nt, N_pad) so Bt*Nt fills the MXU M dimension."""
    n8 = _round_up(N, 8)
    nt = n8 if n8 <= 1024 else 512          # tile N when it is large
    n_pad = _round_up(n8, nt)
    bt = max(1, min(B, 512 // nt)) if nt < 512 else 1
    b_pad = _round_up(B, bt)
    return bt, b_pad, nt, n_pad


def _stn3d_conv_kernel(x_ref, w1_ref, b1_ref, w2_ref, b2_ref, w3_ref, b3_ref,
                       o_ref, acc_ref, *, bt, nt, n_valid, n_pad):
    """Per (batch-block, point-block) tile: conv stack + running max-pool."""
    ni = pl.program_id(1)

    @pl.when(ni == 0)
    def _():
        # ReLU output is >= 0, so 0 is a safe identity for the running max.
        acc_ref[...] = jnp.zeros_like(acc_ref)

    # Flatten (Bt, Nt, CPAD) -> (Bt*Nt, CPAD): points fill the MXU M dim.
    x = x_ref[...].reshape(bt * nt, x_ref.shape[-1])

    # conv1 + bn1 + relu   (CPAD -> 64)
    h = jnp.dot(x, w1_ref[...], preferred_element_type=jnp.float32) + b1_ref[...]
    h = jnp.maximum(h, 0.0)
    # conv2 + bn2 + relu   (64 -> 128)
    h = jnp.dot(h, w2_ref[...], preferred_element_type=jnp.float32) + b2_ref[...]
    h = jnp.maximum(h, 0.0)
    # conv3 + bn3 + relu   (128 -> 1024), dominant matmul: bf16 in / f32 acc
    h = jnp.dot(h.astype(w3_ref.dtype), w3_ref[...],
                preferred_element_type=jnp.float32) + b3_ref[...]
    h = jnp.maximum(h, 0.0)                                  # (Bt*Nt, 1024)

    hb = h.reshape(bt, nt, 1024)
    if n_pad != n_valid:
        # Mask padded point rows to 0 (safe: true max over ReLU output >= 0).
        row = ni * nt + jax.lax.broadcasted_iota(jnp.int32, (bt, nt, 1024), 1)
        hb = jnp.where(row < n_valid, hb, 0.0)

    # Running max over the point axis (torch.max(x, 2)[0]).
    acc_ref[...] = jnp.maximum(acc_ref[...], jnp.max(hb, axis=1))

    @pl.when(ni == pl.num_programs(1) - 1)
    def _():
        o_ref[0] = acc_ref[...]


def _stn3d_head_kernel(g_ref, wf1_ref, bf1_ref, wf2_ref, bf2_ref,
                       wf3_ref, bf3_ref, o_ref):
    """Batched FC head on pooled features: M = B rows at once."""
    f = jnp.dot(g_ref[...], wf1_ref[...], preferred_element_type=jnp.float32) + bf1_ref[...]
    f = jnp.maximum(f, 0.0)                                  # (B, 512)
    f = jnp.dot(f, wf2_ref[...], preferred_element_type=jnp.float32) + bf2_ref[...]
    f = jnp.maximum(f, 0.0)                                  # (B, 256)
    f = jnp.dot(f, wf3_ref[...], preferred_element_type=jnp.float32) + bf3_ref[...]
    o_ref[...] = f                                           # (B, 128) lane-dense


def _fold_bn(w, b, gamma, beta, mean, var, eps=1e-5):
    """Fold eval-mode BatchNorm into an (in,out) weight / (out,) bias pair."""
    scale = gamma / jnp.sqrt(var + eps)          # (out,)
    w_f = w * scale[None, :]                     # (in, out)
    b_f = (b - mean) * scale + beta              # (out,)
    return w_f, b_f


def make_params(channel, key):
    """Deterministic synthetic parameters with the same shapes as STN3d."""
    ks = jax.random.split(key, 32)
    i = iter(range(32))

    def lin(k_in, k_out):
        w = 0.1 * jax.random.normal(ks[next(i)], (k_in, k_out), jnp.float32)
        b = 0.1 * jax.random.normal(ks[next(i)], (k_out,), jnp.float32)
        return w, b

    def bn(n):
        gamma = 1.0 + 0.1 * jax.random.normal(ks[next(i)], (n,), jnp.float32)
        beta = 0.1 * jax.random.normal(ks[next(i)], (n,), jnp.float32)
        mean = 0.1 * jax.random.normal(ks[next(i)], (n,), jnp.float32)
        var = 1.0 + 0.05 * jnp.abs(jax.random.normal(ks[next(i)], (n,), jnp.float32))
        return gamma, beta, mean, var

    p = {}
    p["conv1"] = lin(channel, 64)
    p["conv2"] = lin(64, 128)
    p["conv3"] = lin(128, 1024)
    p["fc1"] = lin(1024, 512)
    p["fc2"] = lin(512, 256)
    p["fc3"] = lin(256, 9)
    p["bn1"] = bn(64)
    p["bn2"] = bn(128)
    p["bn3"] = bn(1024)
    p["bn4"] = bn(512)
    p["bn5"] = bn(256)
    return p


def stn3d_forward(x_bcn, params, *, conv3_dtype=jnp.bfloat16):
    """x_bcn: (B, C, N) float32, matching PyTorch Conv1d input layout."""
    B, C, N = x_bcn.shape
    CPAD = 8      # pad tiny input-channel dim to one sublane group (no further)
    OUTP = 128    # pad fc3 output 9 -> 128 for lane-dense stores

    # Fold BatchNorm (eval mode) into the preceding matmuls.
    w1, b1 = _fold_bn(*params["conv1"], *params["bn1"])
    w2, b2 = _fold_bn(*params["conv2"], *params["bn2"])
    w3, b3 = _fold_bn(*params["conv3"], *params["bn3"])
    wf1, bf1 = _fold_bn(*params["fc1"], *params["bn4"])
    wf2, bf2 = _fold_bn(*params["fc2"], *params["bn5"])
    wf3, bf3 = params["fc3"]

    # Fold the identity offset into the fc3 bias; pad fc3 out dim 9 -> 128.
    iden = jnp.array([1., 0., 0., 0., 1., 0., 0., 0., 1.], jnp.float32)
    bf3 = bf3 + iden
    wf3 = jnp.pad(wf3, ((0, 0), (0, OUTP - 9)))
    bf3 = jnp.pad(bf3, (0, OUTP - 9))

    # Dominant 128->1024 matmul in low precision (f32 accumulate on MXU).
    w3 = w3.astype(conv3_dtype)

    # Tiling: batch the point rows so Bt*Nt fills the MXU M dimension.
    bt, b_pad, nt, n_pad = _choose_tiles(B, N)

    x_bnc = jnp.transpose(x_bcn, (0, 2, 1))                          # (B, N, C)
    x_bnc = jnp.pad(x_bnc, ((0, b_pad - B), (0, n_pad - N), (0, CPAD - C)))
    w1 = jnp.pad(w1, ((0, CPAD - C), (0, 0)))                        # (CPAD, 64)

    def row(v):
        return v.reshape(1, -1)

    conv_operands = [x_bnc, w1, row(b1), w2, row(b2), w3, row(b3)]

    def full_spec(a):
        nd = a.ndim
        return pl.BlockSpec(a.shape, lambda *_, _nd=nd: (0,) * _nd)

    in_specs = [pl.BlockSpec((bt, nt, CPAD), lambda bi, ni: (bi, ni, 0))]
    in_specs += [full_spec(a) for a in conv_operands[1:]]

    # Kernel 1: conv stack + global max-pool -> pooled features (B, 1024).
    pooled = pl.pallas_call(
        functools.partial(_stn3d_conv_kernel, bt=bt, nt=nt,
                          n_valid=N, n_pad=n_pad),
        out_shape=jax.ShapeDtypeStruct((b_pad // bt, bt, 1024), jnp.float32),
        grid_spec=pltpu.PrefetchScalarGridSpec(
            num_scalar_prefetch=0,
            grid=(b_pad // bt, n_pad // nt),
            in_specs=in_specs,
            out_specs=pl.BlockSpec((1, bt, 1024), lambda bi, ni: (bi, 0, 0)),
            scratch_shapes=[pltpu.VMEM((bt, 1024), jnp.float32)]),
        compiler_params=pltpu.CompilerParams(
            dimension_semantics=("parallel", "arbitrary")),
    )(*conv_operands)

    pooled = pooled.reshape(b_pad, 1024)[:B]                         # (B, 1024)

    # Kernel 2: batched FC head (M = B), lane-dense (B, 128) output.
    head = pl.pallas_call(
        _stn3d_head_kernel,
        out_shape=jax.ShapeDtypeStruct((B, OUTP), jnp.float32),
    )(pooled, wf1, row(bf1), wf2, row(bf2), wf3, row(bf3))

    return head[:, :9].reshape(B, 3, 3)


def stn3d_reference(x_bcn, params):
    """Plain-JAX reference with explicit (eval-mode) BatchNorm, PyTorch layout."""
    eps = 1e-5

    def bn(y, bn_p):  # y: (..., n)
        gamma, beta, mean, var = bn_p
        return (y - mean) / jnp.sqrt(var + eps) * gamma + beta

    B = x_bcn.shape[0]
    h = jnp.transpose(x_bcn, (0, 2, 1))                              # (B, N, C)
    h = jax.nn.relu(bn(h @ params["conv1"][0] + params["conv1"][1], params["bn1"]))
    h = jax.nn.relu(bn(h @ params["conv2"][0] + params["conv2"][1], params["bn2"]))
    h = jax.nn.relu(bn(h @ params["conv3"][0] + params["conv3"][1], params["bn3"]))
    g = jnp.max(h, axis=1)                                           # (B, 1024)
    f = jax.nn.relu(bn(g @ params["fc1"][0] + params["fc1"][1], params["bn4"]))
    f = jax.nn.relu(bn(f @ params["fc2"][0] + params["fc2"][1], params["bn5"]))
    f = f @ params["fc3"][0] + params["fc3"][1]
    iden = jnp.array([1., 0., 0., 0., 1., 0., 0., 0., 1.], jnp.float32)
    f = f + iden[None, :]
    return f.reshape(B, 3, 3)


if __name__ == "__main__":
    key = jax.random.PRNGKey(0)
    k_x, k_p = jax.random.split(key)

    B, C, N = 2, 4, 16                    # batch, channels, number of points
    x = jax.random.normal(k_x, (B, C, N), jnp.float32)   # PyTorch NCW layout
    params = make_params(C, k_p)

    ref = stn3d_reference(x, params)

    # Full-f32 path: bit-accurate check against the plain-JAX reference.
    out_f32 = jax.block_until_ready(
        stn3d_forward(x, params, conv3_dtype=jnp.float32))
    assert out_f32.shape == (B, 3, 3)
    assert jnp.allclose(out_f32, ref, atol=1e-4, rtol=1e-4), (out_f32, ref)

    # bf16 conv3 path (default, fast on v5e/v6e/v7x MXUs): looser tolerance.
    out_bf16 = jax.block_until_ready(
        stn3d_forward(x, params, conv3_dtype=jnp.bfloat16))
    assert out_bf16.shape == (B, 3, 3)
    assert jnp.allclose(out_bf16, ref, atol=1e-1, rtol=5e-2), (out_bf16, ref)

    print("KERNEL_OK")
</pallas_src>

<mosaic_0001>
module attributes {stable_mosaic.version = 11 : i64} {
  func.func @_stn3d_conv_kernel(%arg0: i32, %arg1: i32, %arg2: memref<2x16x8xf32, #tpu.memory_space<vmem>>, %arg3: memref<8x64xf32, #tpu.memory_space<vmem>>, %arg4: memref<1x64xf32, #tpu.memory_space<vmem>>, %arg5: memref<64x128xf32, #tpu.memory_space<vmem>>, %arg6: memref<1x128xf32, #tpu.memory_space<vmem>>, %arg7: memref<128x1024xf32, #tpu.memory_space<vmem>>, %arg8: memref<1x1024xf32, #tpu.memory_space<vmem>>, %arg9: memref<1x2x1024xf32, #tpu.memory_space<vmem>>, %arg10: memref<2x1024xf32, #tpu.memory_space<vmem>>) attributes {dimension_semantics = [#tpu.dimension_semantics<parallel>, #tpu.dimension_semantics<arbitrary>], iteration_bounds = array<i64: 1, 1>, scalar_prefetch = 0 : i64, scratch_operands = 1 : i64, tpu.core_type = #tpu.core_type<tc>, window_params = [{transform_indices = @transform_0, window_bounds = array<i64: 2, 16, 8>}, {pipeline_mode = #tpu.pipeline_mode<synchronous>, transform_indices = @transform_1, window_bounds = array<i64: 8, 64>}, {pipeline_mode = #tpu.pipeline_mode<synchronous>, transform_indices = @transform_2, window_bounds = array<i64: 1, 64>}, {pipeline_mode = #tpu.pipeline_mode<synchronous>, transform_indices = @transform_3, window_bounds = array<i64: 64, 128>}, {pipeline_mode = #tpu.pipeline_mode<synchronous>, transform_indices = @transform_4, window_bounds = array<i64: 1, 128>}, {pipeline_mode = #tpu.pipeline_mode<synchronous>, transform_indices = @transform_5, window_bounds = array<i64: 128, 1024>}, {pipeline_mode = #tpu.pipeline_mode<synchronous>, transform_indices = @transform_6, window_bounds = array<i64: 1, 1024>}, {transform_indices = @transform_7, window_bounds = array<i64: 1, 2, 1024>}]} {
    %c0_i32 = arith.constant 0 : i32
    %0 = arith.cmpi eq, %arg1, %c0_i32 : i32
    %1 = arith.extui %0 : i1 to i32
    %c0_i32_0 = arith.constant 0 : i32
    %2 = arith.cmpi ne, %1, %c0_i32_0 : i32
    scf.if %2 {
      %cst_27 = arith.constant 0.000000e+00 : f32
      %34 = vector.broadcast %cst_27 : f32 to vector<2x1024xf32>
      %c0_28 = arith.constant 0 : index
      %c0_29 = arith.constant 0 : index
      %35 = vector.load %arg10[%c0_28, %c0_29] : memref<2x1024xf32, #tpu.memory_space<vmem>>, vector<2x1024xf32>
      tpu.vector_store %arg10[%c0_28, %c0_29], %34 {strides = array<i32>} : memref<2x1024xf32, #tpu.memory_space<vmem>>, vector<2x1024xf32>,
    } else {
    }
    %c0 = arith.constant 0 : index
    %c0_1 = arith.constant 0 : index
    %c0_2 = arith.constant 0 : index
    %3 = vector.load %arg2[%c0, %c0_1, %c0_2] : memref<2x16x8xf32, #tpu.memory_space<vmem>>, vector<2x16x8xf32>
    %4 = vector.shape_cast %3 : vector<2x16x8xf32> to vector<32x8xf32>
    %c0_3 = arith.constant 0 : index
    %c0_4 = arith.constant 0 : index
    %5 = vector.load %arg3[%c0_3, %c0_4] : memref<8x64xf32, #tpu.memory_space<vmem>>, vector<8x64xf32>
    %cst = arith.constant dense<0.000000e+00> : vector<32x64xf32>
    %6 = tpu.matmul %4, %5, %cst {dimension_numbers = #tpu.dot_dimension_numbers<[1], [0], [0], [1], [0, 0, 1, 1], [], []>} : vector<32x8xf32>, vector<8x64xf32>, vector<32x64xf32> -> vector<32x64xf32>
    %c0_5 = arith.constant 0 : index
    %c0_6 = arith.constant 0 : index
    %7 = vector.load %arg4[%c0_5, %c0_6] : memref<1x64xf32, #tpu.memory_space<vmem>>, vector<1x64xf32>
    %8 = vector.broadcast %7 : vector<1x64xf32> to vector<32x64xf32>
    %9 = arith.addf %6, %8 : vector<32x64xf32>
    %cst_7 = arith.constant 0.000000e+00 : f32
    %10 = vector.broadcast %cst_7 : f32 to vector<32x64xf32>
    %11 = arith.maximumf %9, %10 : vector<32x64xf32>
    %c0_8 = arith.constant 0 : index
    %c0_9 = arith.constant 0 : index
    %12 = vector.load %arg5[%c0_8, %c0_9] : memref<64x128xf32, #tpu.memory_space<vmem>>, vector<64x128xf32>
    %cst_10 = arith.constant dense<0.000000e+00> : vector<32x128xf32>
    %13 = tpu.matmul %11, %12, %cst_10 {dimension_numbers = #tpu.dot_dimension_numbers<[1], [0], [0], [1], [0, 0, 1, 1], [], []>} : vector<32x64xf32>, vector<64x128xf32>, vector<32x128xf32> -> vector<32x128xf32>
    %c0_11 = arith.constant 0 : index
    %c0_12 = arith.constant 0 : index
    %14 = vector.load %arg6[%c0_11, %c0_12] : memref<1x128xf32, #tpu.memory_space<vmem>>, vector<1x128xf32>
    %15 = vector.broadcast %14 : vector<1x128xf32> to vector<32x128xf32>
    %16 = arith.addf %13, %15 : vector<32x128xf32>
    %cst_13 = arith.constant 0.000000e+00 : f32
    %17 = vector.broadcast %cst_13 : f32 to vector<32x128xf32>
    %18 = arith.maximumf %16, %17 : vector<32x128xf32>
    %c0_14 = arith.constant 0 : index
    %c0_15 = arith.constant 0 : index
    %19 = vector.load %arg7[%c0_14, %c0_15] : memref<128x1024xf32, #tpu.memory_space<vmem>>, vector<128x1024xf32>
    %cst_16 = arith.constant dense<0.000000e+00> : vector<32x1024xf32>
    %20 = tpu.matmul %18, %19, %cst_16 {dimension_numbers = #tpu.dot_dimension_numbers<[1], [0], [0], [1], [0, 0, 1, 1], [], []>} : vector<32x128xf32>, vector<128x1024xf32>, vector<32x1024xf32> -> vector<32x1024xf32>
    %c0_17 = arith.constant 0 : index
    %c0_18 = arith.constant 0 : index
    %21 = vector.load %arg8[%c0_17, %c0_18] : memref<1x1024xf32, #tpu.memory_space<vmem>>, vector<1x1024xf32>
    %22 = vector.broadcast %21 : vector<1x1024xf32> to vector<32x1024xf32>
    %23 = arith.addf %20, %22 : vector<32x1024xf32>
    %cst_19 = arith.constant 0.000000e+00 : f32
    %24 = vector.broadcast %cst_19 : f32 to vector<32x1024xf32>
    %25 = arith.maximumf %23, %24 : vector<32x1024xf32>
    %26 = vector.shape_cast %25 : vector<32x1024xf32> to vector<2x16x1024xf32>
    %c0_20 = arith.constant 0 : index
    %c0_21 = arith.constant 0 : index
    %27 = vector.load %arg10[%c0_20, %c0_21] : memref<2x1024xf32, #tpu.memory_space<vmem>>, vector<2x1024xf32>
    %cst_22 = arith.constant dense<0xFF800000> : vector<2x1024xf32>
    %28 = vector.multi_reduction <maximumf>, %26, %cst_22 [1] : vector<2x16x1024xf32> to vector<2x1024xf32>
    %29 = arith.maximumf %27, %28 : vector<2x1024xf32>
    %c0_23 = arith.constant 0 : index
    %c0_24 = arith.constant 0 : index
    %30 = vector.load %arg10[%c0_23, %c0_24] : memref<2x1024xf32, #tpu.memory_space<vmem>>, vector<2x1024xf32>
    tpu.vector_store %arg10[%c0_23, %c0_24], %29 {strides = array<i32>} : memref<2x1024xf32, #tpu.memory_space<vmem>>, vector<2x1024xf32>,
    %c0_i32_25 = arith.constant 0 : i32
    %31 = arith.cmpi eq, %arg1, %c0_i32_25 : i32
    %32 = arith.extui %31 : i1 to i32
    %c0_i32_26 = arith.constant 0 : i32
    %33 = arith.cmpi ne, %32, %c0_i32_26 : i32
    scf.if %33 {
      %c0_27 = arith.constant 0 : index
      %c0_28 = arith.constant 0 : index
      %34 = vector.load %arg10[%c0_27, %c0_28] : memref<2x1024xf32, #tpu.memory_space<vmem>>, vector<2x1024xf32>
      %c0_29 = arith.constant 0 : index
      %c0_30 = arith.constant 0 : index
      %c0_31 = arith.constant 0 : index
      %35 = vector.load %arg9[%c0_29, %c0_30, %c0_31] : memref<1x2x1024xf32, #tpu.memory_space<vmem>>, vector<1x2x1024xf32>
      %36 = vector.shape_cast %35 : vector<1x2x1024xf32> to vector<2x1024xf32>
      %37 = vector.shape_cast %34 : vector<2x1024xf32> to vector<1x2x1024xf32>
      tpu.vector_store %arg9[%c0_29, %c0_30, %c0_31], %37 {strides = array<i32>} : memref<1x2x1024xf32, #tpu.memory_space<vmem>>, vector<1x2x1024xf32>,
    } else {
    }
    return
  }
  func.func @transform_0(%arg0: i32, %arg1: i32) -> (i32, i32, i32) {
    %c0_i32 = arith.constant 0 : i32
    %c0_i32_0 = arith.constant 0 : i32
    return %arg0, %arg1, %c0_i32 : i32, i32, i32
  }
  func.func @transform_1(%arg0: i32, %arg1: i32) -> (i32, i32) {
    %c0_i32 = arith.constant 0 : i32
    %c0_i32_0 = arith.constant 0 : i32
    %c0_i32_1 = arith.constant 0 : i32
    return %c0_i32, %c0_i32_0 : i32, i32
  }
  func.func @transform_2(%arg0: i32, %arg1: i32) -> (i32, i32) {
    %c0_i32 = arith.constant 0 : i32
    %c0_i32_0 = arith.constant 0 : i32
    %c0_i32_1 = arith.constant 0 : i32
    return %c0_i32, %c0_i32_0 : i32, i32
  }
  func.func @transform_3(%arg0: i32, %arg1: i32) -> (i32, i32) {
    %c0_i32 = arith.constant 0 : i32
    %c0_i32_0 = arith.constant 0 : i32
    %c0_i32_1 = arith.constant 0 : i32
    return %c0_i32, %c0_i32_0 : i32, i32
  }
  func.func @transform_4(%arg0: i32, %arg1: i32) -> (i32, i32) {
    %c0_i32 = arith.constant 0 : i32
    %c0_i32_0 = arith.constant 0 : i32
    %c0_i32_1 = arith.constant 0 : i32
    return %c0_i32, %c0_i32_0 : i32, i32
  }
  func.func @transform_5(%arg0: i32, %arg1: i32) -> (i32, i32) {
    %c0_i32 = arith.constant 0 : i32
    %c0_i32_0 = arith.constant 0 : i32
    %c0_i32_1 = arith.constant 0 : i32
    return %c0_i32, %c0_i32_0 : i32, i32
  }
  func.func @transform_6(%arg0: i32, %arg1: i32) -> (i32, i32) {
    %c0_i32 = arith.constant 0 : i32
    %c0_i32_0 = arith.constant 0 : i32
    %c0_i32_1 = arith.constant 0 : i32
    return %c0_i32, %c0_i32_0 : i32, i32
  }
  func.func @transform_7(%arg0: i32, %arg1: i32) -> (i32, i32, i32) {
    %c0_i32 = arith.constant 0 : i32
    %c0_i32_0 = arith.constant 0 : i32
    %c0_i32_1 = arith.constant 0 : i32
    return %arg0, %c0_i32, %c0_i32_0 : i32, i32, i32
  }
}

</mosaic_0001>

<llo_original>
// kernel: tpu_custom_call.1
$region0: #{tpu_custom_call.1}
  #allocation0 [shape = 'u32[]', space=smem, size = 0x4, offset = 0x4, fixed_abs, tag = 'smem constant byte address 0x4 - core index']
  #allocation1 [shape = 'u32[144,128]{1,0:T(1,128)}', space=vmem, size = 0x12000, scoped, tag = 'internal scratch']
  #allocation2 [shape = 'f32[2,1024]{1,0:T(2,128)}', space=vmem, size = 0x2000, scoped, tag = 'scratch operand']
  %s0 = inlined_call_operand.vmem [shape: f32[2,16,8], index: 0, kind: input, shape index: {}]
  %s1 = inlined_call_operand.vmem [shape: f32[8,64], index: 1, kind: input, shape index: {}]
  %s2 = inlined_call_operand.vmem [shape: f32[1,64], index: 2, kind: input, shape index: {}]
  %s3 = inlined_call_operand.hbm [shape: f32[64,128], index: 3, kind: input, shape index: {}]
  %s4 = inlined_call_operand.vmem [shape: f32[1,128], index: 4, kind: input, shape index: {}]
  %s5 = inlined_call_operand.hbm [shape: f32[128,1024], index: 5, kind: input, shape index: {}]
  %s6 = inlined_call_operand.vmem [shape: f32[1,1024], index: 6, kind: input, shape index: {}]
  %s7 = inlined_call_operand.hbm [shape: f32[1,2,1024], index: 7, kind: output, shape index: {}]
  %s8 = sld [smem:[#allocation0]]
  $region54: #{tpu_custom_call.1} parent=0
    _
  %s10 = ssub.s32 1, %s8
  %s11 = scalar_select 0, %s10, %s8
  $region1: #{tpu_custom_call.1} parent=0
    #allocation3 [shape = 'u8[32768]{0}', space=vmem, size = 0x8000, scoped, tag = 'input window, operand 3, single buffered']
    #allocation4 [shape = 's32[1]{0}', space=sflag, size = 0x4, scoped, tag = 'scoped memory for tpu_custom_call.1']
    #allocation5 [shape = 's32[1]{0}', space=sflag, size = 0x4, scoped, tag = 'scoped memory for tpu_custom_call.1']
    #allocation6 [shape = 'u8[524288]{0}', space=vmem, size = 0x80000, scoped, tag = 'input window, operand 5, single buffered']
    #allocation7 [shape = 's32[1]{0}', space=sflag, size = 0x4, scoped, tag = 'scoped memory for tpu_custom_call.1']
    #allocation8 [shape = 'u8[8192]{0}', space=vmem, size = 0x2000, scoped, tag = 'output window, operand 0, single buffered']
    %12 = vsyncpa [#allocation4], 0
    %13 = vsyncpa [#allocation7], 0
    %14 = vsyncpa [#allocation5], 0
    // Predicated region
    $region2: #{tpu_custom_call.1} parent=1 // pred_check
      _
    $region3: #{tpu_custom_call.1} parent=1 // pred_check_branch
      %16 = sbr.rel (0) target = $region5
    $region4: #{tpu_custom_call.1} parent=1 // pred_region
      _
    $region5: #{tpu_custom_call.1} parent=1 // pred_fallthru
      _
    // Predicated region
    $region6: #{tpu_custom_call.1} parent=1 // pred_check
      _
    $region7: #{tpu_custom_call.1} parent=1 // pred_check_branch
      %18 = sbr.rel (0) target = $region9
    $region8: #{tpu_custom_call.1} parent=1 // pred_region
      _
    $region9: #{tpu_custom_call.1} parent=1 // pred_fallthru
      _
    // Predicated region
    $region10: #{tpu_custom_call.1} parent=1 // pred_check
      _
    $region11: #{tpu_custom_call.1} parent=1 // pred_check_branch
      %20 = sbr.rel (0) target = $region13
    $region12: #{tpu_custom_call.1} parent=1 // pred_region
      _
    $region13: #{tpu_custom_call.1} parent=1 // pred_fallthru
      _
    // Predicated region
    $region14: #{tpu_custom_call.1} parent=1 // pred_check
      _
    $region15: #{tpu_custom_call.1} parent=1 // pred_check_branch
      %22 = sbr.rel (0) target = $region17
    $region16: #{tpu_custom_call.1} parent=1 // pred_region
      %s24 = ssub.s32 1024, 1024
      %25 = vsyncadd [#allocation4], %s24
      %s26 = sshll.u32 [#allocation3], 4
      %s27 = int_to_ptr.vmem [resolvable:$true] %s26
      %32 = dma.hbm_to_vmem [thread:$0]  %s3, 1024, %s27, [#allocation4], 128, 128, 8
    $region17: #{tpu_custom_call.1} parent=1 // pred_fallthru
      _
    // Predicated region
    $region18: #{tpu_custom_call.1} parent=1 // pred_check
      _
    $region19: #{tpu_custom_call.1} parent=1 // pred_check_branch
      %34 = sbr.rel (0) target = $region21
    $region20: #{tpu_custom_call.1} parent=1 // pred_region
      _
    $region21: #{tpu_custom_call.1} parent=1 // pred_fallthru
      _
    // Predicated region
    $region22: #{tpu_custom_call.1} parent=1 // pred_check
      _
    $region23: #{tpu_custom_call.1} parent=1 // pred_check_branch
      %36 = sbr.rel (0) target = $region25
    $region24: #{tpu_custom_call.1} parent=1 // pred_region
      %s38 = ssub.s32 16384, 16384
      %39 = vsyncadd [#allocation7], %s38
      %s40 = sshll.u32 [#allocation6], 4
      %s41 = int_to_ptr.vmem [resolvable:$true] %s40
      %46 = dma.hbm_to_vmem [thread:$0]  %s5, 16384, %s41, [#allocation7], 1024, 1024, 64
    $region25: #{tpu_custom_call.1} parent=1 // pred_fallthru
      _
    // Predicated region
    $region26: #{tpu_custom_call.1} parent=1 // pred_check
      _
    $region27: #{tpu_custom_call.1} parent=1 // pred_check_branch
      %48 = sbr.rel (0) target = $region29
    $region28: #{tpu_custom_call.1} parent=1 // pred_region
      _
    $region29: #{tpu_custom_call.1} parent=1 // pred_fallthru
      _
    // Predicated region
    $region30: #{tpu_custom_call.1} parent=1 // pred_check
      _
    $region31: #{tpu_custom_call.1} parent=1 // pred_check_branch
      %50 = sbr.rel (0) target = $region33
    $region32: #{tpu_custom_call.1} parent=1 // pred_region
      %51 = dma.done [#allocation4], 1024
    $region33: #{tpu_custom_call.1} parent=1 // pred_fallthru
      _
    // Predicated region
    $region34: #{tpu_custom_call.1} parent=1 // pred_check
      _
    $region35: #{tpu_custom_call.1} parent=1 // pred_check_branch
      %53 = sbr.rel (0) target = $region37
    $region36: #{tpu_custom_call.1} parent=1 // pred_region
      %54 = dma.done [#allocation7], 16384
    $region37: #{tpu_custom_call.1} parent=1 // pred_fallthru
      _
    %p55 = scmp.eq.s32.totalorder 0, 0
    // Predicated region
    $region38: #{tpu_custom_call.1} parent=1 // pred_check
      %p56 = pneg %p55
    $region39: #{tpu_custom_call.1} parent=1 // pred_check_branch
      %58 = sbr.rel (%p56) target = $region41
    $region40: #{tpu_custom_call.1} parent=1 // pred_region
      %59 = vst [vmem:[#allocation2] sm:$0xff] 0.0
      %60 = vst [vmem:[#allocation2 + $0x8] sm:$0xff] 0.0
    $region41: #{tpu_custom_call.1} parent=1 // pred_fallthru
      _
    %v61 = vld [vmem:[%s0] sm:$0xff]
    %v62 = vld [vmem:[%s0 + $0x8] sm:$0xff]
    %v63 = vld [vmem:[%s0 + $0x10] sm:$0xff]
    %v64 = vld [vmem:[%s0 + $0x18] sm:$0xff]
    %v65 = vld [vmem:[%s1] sm:$0xff]
    %v66 = vld [vmem:[%s2] sm:$0x1]
    %v68 = vlaneseq
    %v69 = vshrl.u32 %v68, 7
    %v70 = vsub.s32 0, %v69
    %v71 = vrot.slane %v66, %v70
    %vm73 = vcmask 64512
    %v75 = vsel %vm73, %v61, 0
    %v78 = vsel %vm73, %v62, 0
    %v81 = vsel %vm73, %v63, 0
    %v84 = vsel %vm73, %v64, 0
    %86 = vmatprep.subr.mxu0 0.0
    %87 = vmatpush1.msra.mxu0 %v65
    %88 = vmatprep.subr.mxu0 0.0
    %89 = vmatpush1.msra.mxu0 0.0
    %90 = vmatprep.subr.mxu0 0.0
    %91 = vmatpush1.msra.mxu0 0.0
    %92 = vmatprep.subr.mxu0 0.0
    %93 = vmatpush1.msra.mxu0 0.0
    %94 = vmatprep.subr.mxu0 0.0
    %95 = vmatpush1.msra.mxu0 0.0
    %96 = vmatprep.subr.mxu0 0.0
    %97 = vmatpush1.msra.mxu0 0.0
    %98 = vmatprep.subr.mxu0 0.0
    %99 = vmatpush1.msra.mxu0 0.0
    %100 = vmatprep.subr.mxu0 0.0
    %101 = vmatpush1.msra.mxu0 0.0
    %102 = vmatprep.subr.mxu0 0.0
    %103 = vmatpush1.msra.mxu0 0.0
    %104 = vmatprep.subr.mxu0 0.0
    %105 = vmatpush1.msra.mxu0 0.0
    %106 = vmatprep.subr.mxu0 0.0
    %107 = vmatpush1.msra.mxu0 0.0
    %108 = vmatprep.subr.mxu0 0.0
    %109 = vmatpush1.msra.mxu0 0.0
    %110 = vmatprep.subr.mxu0 0.0
    %111 = vmatpush1.msra.mxu0 0.0
    %112 = vmatprep.subr.mxu0 0.0
    %113 = vmatpush1.msra.mxu0 0.0
    %114 = vmatprep.subr.mxu0 0.0
    %115 = vmatpush1.msra.mxu0 0.0
    %116 = vmatprep.subr.mxu0 0.0
    %117 = vmatpush1.msra.mxu0 0.0
    %118 = vmatprep.subr.mxu0 0.0
    %119 = vmatpush1.msra.mxu0 0.0
    %120 = vmatprep.subr.mxu0 0.0
    %121 = vmatpush1.msra.mxu0 0.0
    %122 = vmatprep.subr.mxu0 0.0
    %123 = vmatpush1.msra.mxu0 0.0
    %124 = vmatprep.subr.mxu0 0.0
    %125 = vmatpush1.msra.mxu0 0.0
    %126 = vmatprep.subr.mxu0 0.0
    %127 = vmatpush1.msra.mxu0 0.0
    %128 = vmatprep.subr.mxu0 0.0
    %129 = vmatpush1.msra.mxu0 0.0
    %130 = vmatprep.subr.mxu0 0.0
    %131 = vmatpush1.msra.mxu0 0.0
    %132 = vmatprep.subr.mxu0 0.0
    %133 = vmatpush1.msra.mxu0 0.0
    %134 = vmatprep.subr.mxu0 0.0
    %135 = vmatpush1.msra.mxu0 0.0
    %136 = vmatprep.subr.mxu0 0.0
    %137 = vmatpush1.msra.mxu0 0.0
    %138 = vmatprep.subr.mxu0 0.0
    %139 = vmatpush1.msra.mxu0 0.0
    %140 = vmatprep.subr.mxu0 0.0
    %141 = vmatpush1.msra.mxu0 0.0
    %142 = vmatprep.subr.mxu0 0.0
    %143 = vmatpush1.msra.mxu0 0.0
    %144 = vmatprep.subr.mxu0 0.0
    %145 = vmatpush1.msra.mxu0 0.0
    %146 = vmatprep.subr.mxu0 0.0
    %147 = vmatpush1.msra.mxu0 0.0
    %148 = vmatprep.subr.mxu0 0.0
    %149 = vmatpush1.msra.mxu0 0.0
    %150 = vmatprep.mubr.f32.mxu0 0.0
    %151 = vmatmul.mubr.f32.gmra.mrb[0].mxu0 %v75
    %v152 = vpop.f32.mrb[0].mxu0
    %v153 = vadd.f32 %v71, %v152
    %v154 = vpop.f32.mrb[0].mxu0
    %155 = vmatprep.mubr.f32.mxu0 0.0
    %156 = vmatmul.mubr.f32.gmra.mrb[0].mxu0 %v78
    %v157 = vpop.f32.mrb[0].mxu0
    %v158 = vadd.f32 %v71, %v157
    %v159 = vpop.f32.mrb[0].mxu0
    %160 = vmatprep.mubr.f32.mxu0 0.0
    %161 = vmatmul.mubr.f32.gmra.mrb[0].mxu0 %v81
    %v162 = vpop.f32.mrb[0].mxu0
    %v163 = vadd.f32 %v71, %v162
    %v164 = vpop.f32.mrb[0].mxu0
    %165 = vmatprep.mubr.f32.mxu0 0.0
    %166 = vmatmul.mubr.f32.gmra.mrb[0].mxu0 %v84
    %v167 = vpop.f32.mrb[0].mxu0
    %v168 = vadd.f32 %v71, %v167
    %v169 = vpop.f32.mrb[0].mxu0
    %170 = vdwg.mxu0
    %v171 = vmax.f32 %v153, 0.0
    %v172 = vmax.f32 %v158, 0.0
    %v173 = vmax.f32 %v163, 0.0
    %v174 = vmax.f32 %v168, 0.0
    %v175 = vld [vmem:[#allocation3] sm:$0xff]
    %v176 = vld [vmem:[#allocation3 + $0x8] sm:$0xff]
    %v177 = vld [vmem:[#allocation3 + $0x10] sm:$0xff]
    %v178 = vld [vmem:[#allocation3 + $0x18] sm:$0xff]
    %v179 = vld [vmem:[#allocation3 + $0x20] sm:$0xff]
    %v180 = vld [vmem:[#allocation3 + $0x28] sm:$0xff]
    %v181 = vld [vmem:[#allocation3 + $0x30] sm:$0xff]
    %v182 = vld [vmem:[#allocation3 + $0x38] sm:$0xff]
    %v183 = vld [vmem:[%s4] sm:$0x1]
    %v185 = vlaneseq
    %v186 = vshrl.u32 %v185, 7
    %v187 = vsub.s32 0, %v186
    %v188 = vrot.slane %v183, %v187
    %vm190 = vcmask 523264
    %v192 = vsel %vm190, %v171, 0
    %v195 = vsel %vm190, %v172, 0
    %v198 = vsel %vm190, %v173, 0
    %v201 = vsel %vm190, %v174, 0
    %203 = vmatprep.subr.mxu0 0.0
    %204 = vmatpush1.msra.mxu0 %v175
    %205 = vmatprep.subr.mxu0 0.0
    %206 = vmatpush1.msra.mxu0 %v176
    %207 = vmatprep.subr.mxu0 0.0
    %208 = vmatpush1.msra.mxu0 %v177
    %209 = vmatprep.subr.mxu0 0.0
    %210 = vmatpush1.msra.mxu0 %v178
    %211 = vmatprep.subr.mxu0 0.0
    %212 = vmatpush1.msra.mxu0 %v179
    %213 = vmatprep.subr.mxu0 0.0
    %214 = vmatpush1.msra.mxu0 %v180
    %215 = vmatprep.subr.mxu0 0.0
    %216 = vmatpush1.msra.mxu0 %v181
    %217 = vmatprep.subr.mxu0 0.0
    %218 = vmatpush1.msra.mxu0 %v182
    %219 = vmatprep.subr.mxu0 0.0
    %220 = vmatpush1.msra.mxu0 0.0
    %221 = vmatprep.subr.mxu0 0.0
    %222 = vmatpush1.msra.mxu0 0.0
    %223 = vmatprep.subr.mxu0 0.0
    %224 = vmatpush1.msra.mxu0 0.0
    %225 = vmatprep.subr.mxu0 0.0
    %226 = vmatpush1.msra.mxu0 0.0
    %227 = vmatprep.subr.mxu0 0.0
    %228 = vmatpush1.msra.mxu0 0.0
    %229 = vmatprep.subr.mxu0 0.0
    %230 = vmatpush1.msra.mxu0 0.0
    %231 = vmatprep.subr.mxu0 0.0
    %232 = vmatpush1.msra.mxu0 0.0
    %233 = vmatprep.subr.mxu0 0.0
    %234 = vmatpush1.msra.mxu0 0.0
    %235 = vmatprep.subr.mxu0 0.0
    %236 = vmatpush1.msra.mxu0 0.0
    %237 = vmatprep.subr.mxu0 0.0
    %238 = vmatpush1.msra.mxu0 0.0
    %239 = vmatprep.subr.mxu0 0.0
    %240 = vmatpush1.msra.mxu0 0.0
    %241 = vmatprep.subr.mxu0 0.0
    %242 = vmatpush1.msra.mxu0 0.0
    %243 = vmatprep.subr.mxu0 0.0
    %244 = vmatpush1.msra.mxu0 0.0
    %245 = vmatprep.subr.mxu0 0.0
    %246 = vmatpush1.msra.mxu0 0.0
    %247 = vmatprep.subr.mxu0 0.0
    %248 = vmatpush1.msra.mxu0 0.0
    %249 = vmatprep.subr.mxu0 0.0
    %250 = vmatpush1.msra.mxu0 0.0
    %251 = vmatprep.subr.mxu0 0.0
    %252 = vmatpush1.msra.mxu0 0.0
    %253 = vmatprep.subr.mxu0 0.0
    %254 = vmatpush1.msra.mxu0 0.0
    %255 = vmatprep.subr.mxu0 0.0
    %256 = vmatpush1.msra.mxu0 0.0
    %257 = vmatprep.subr.mxu0 0.0
    %258 = vmatpush1.msra.mxu0 0.0
    %259 = vmatprep.subr.mxu0 0.0
    %260 = vmatpush1.msra.mxu0 0.0
    %261 = vmatprep.subr.mxu0 0.0
    %262 = vmatpush1.msra.mxu0 0.0
    %263 = vmatprep.subr.mxu0 0.0
    %264 = vmatpush1.msra.mxu0 0.0
    %265 = vmatprep.subr.mxu0 0.0
    %266 = vmatpush1.msra.mxu0 0.0
    %267 = vmatprep.mubr.f32.mxu0 0.0
    %268 = vmatmul.mubr.f32.gmra.mrb[0].mxu0 %v192
    %v269 = vpop.f32.mrb[0].mxu0
    %v270 = vadd.f32 %v188, %v269
    %v271 = vpop.f32.mrb[0].mxu0
    %272 = vmatprep.mubr.f32.mxu0 0.0
    %273 = vmatmul.mubr.f32.gmra.mrb[0].mxu0 %v195
    %v274 = vpop.f32.mrb[0].mxu0
    %v275 = vadd.f32 %v188, %v274
    %v276 = vpop.f32.mrb[0].mxu0
    %277 = vmatprep.mubr.f32.mxu0 0.0
    %278 = vmatmul.mubr.f32.gmra.mrb[0].mxu0 %v198
    %v279 = vpop.f32.mrb[0].mxu0
    %v280 = vadd.f32 %v188, %v279
    %v281 = vpop.f32.mrb[0].mxu0
    %282 = vmatprep.mubr.f32.mxu0 0.0
    %283 = vmatmul.mubr.f32.gmra.mrb[0].mxu0 %v201
    %v284 = vpop.f32.mrb[0].mxu0
    %v285 = vadd.f32 %v188, %v284
    %v286 = vpop.f32.mrb[0].mxu0
    %287 = vdwg.mxu0
    %v288 = vmax.f32 %v270, 0.0
    %v289 = vmax.f32 %v275, 0.0
    %v290 = vmax.f32 %v280, 0.0
    %v291 = vmax.f32 %v285, 0.0
    %v292 = vld [vmem:[#allocation6] sm:$0xff]
    %v293 = vld [vmem:[#allocation6 + $0x8] sm:$0xff]
    %v294 = vld [vmem:[#allocation6 + $0x10] sm:$0xff]
    %v295 = vld [vmem:[#allocation6 + $0x18] sm:$0xff]
    %v296 = vld [vmem:[#allocation6 + $0x20] sm:$0xff]
    %v297 = vld [vmem:[#allocation6 + $0x28] sm:$0xff]
    %v298 = vld [vmem:[#allocation6 + $0x30] sm:$0xff]
    %v299 = vld [vmem:[#allocation6 + $0x38] sm:$0xff]
    %v300 = vld [vmem:[#allocation6 + $0x40] sm:$0xff]
    %v301 = vld [vmem:[#allocation6 + $0x48] sm:$0xff]
    %v302 = vld [vmem:[#allocation6 + $0x50] sm:$0xff]
    %v303 = vld [vmem:[#allocation6 + $0x58] sm:$0xff]
    %v304 = vld [vmem:[#allocation6 + $0x60] sm:$0xff]
    %v305 = vld [vmem:[#allocation6 + $0x68] sm:$0xff]
    %v306 = vld [vmem:[#allocation6 + $0x70] sm:$0xff]
    %v307 = vld [vmem:[#allocation6 + $0x78] sm:$0xff]
    %v308 = vld [vmem:[#allocation6 + $0x80] sm:$0xff]
    %v309 = vld [vmem:[#allocation6 + $0x88] sm:$0xff]
    %v310 = vld [vmem:[#allocation6 + $0x90] sm:$0xff]
    %v311 = vld [vmem:[#allocation6 + $0x98] sm:$0xff]
    %v312 = vld [vmem:[#allocation6 + $0xa0] sm:$0xff]
    %v313 = vld [vmem:[#allocation6 + $0xa8] sm:$0xff]
    %v314 = vld [vmem:[#allocation6 + $0xb0] sm:$0xff]
    %v315 = vld [vmem:[#allocation6 + $0xb8] sm:$0xff]
    %v316 = vld [vmem:[#allocation6 + $0xc0] sm:$0xff]
    %v317 = vld [vmem:[#allocation6 + $0xc8] sm:$0xff]
    %v318 = vld [vmem:[#allocation6 + $0xd0] sm:$0xff]
    %v319 = vld [vmem:[#allocation6 + $0xd8] sm:$0xff]
    %v320 = vld [vmem:[#allocation6 + $0xe0] sm:$0xff]
    %v321 = vld [vmem:[#allocation6 + $0xe8] sm:$0xff]
    %v322 = vld [vmem:[#allocation6 + $0xf0] sm:$0xff]
    %v323 = vld [vmem:[#allocation6 + $0xf8] sm:$0xff]
    %v324 = vld [vmem:[#allocation6 + $0x100] sm:$0xff]
    %v325 = vld [vmem:[#allocation6 + $0x108] sm:$0xff]
    %v326 = vld [vmem:[#allocation6 + $0x110] sm:$0xff]
    %v327 = vld [vmem:[#allocation6 + $0x118] sm:$0xff]
    %v328 = vld [vmem:[#allocation6 + $0x120] sm:$0xff]
    %v329 = vld [vmem:[#allocation6 + $0x128] sm:$0xff]
    %v330 = vld [vmem:[#allocation6 + $0x130] sm:$0xff]
    %v331 = vld [vmem:[#allocation6 + $0x138] sm:$0xff]
    %v332 = vld [vmem:[#allocation6 + $0x140] sm:$0xff]
    %v333 = vld [vmem:[#allocation6 + $0x148] sm:$0xff]
    %v334 = vld [vmem:[#allocation6 + $0x150] sm:$0xff]
    %v335 = vld [vmem:[#allocation6 + $0x158] sm:$0xff]
    %v336 = vld [vmem:[#allocation6 + $0x160] sm:$0xff]
    %v337 = vld [vmem:[#allocation6 + $0x168] sm:$0xff]
    %v338 = vld [vmem:[#allocation6 + $0x170] sm:$0xff]
    %v339 = vld [vmem:[#allocation6 + $0x178] sm:$0xff]
    %v340 = vld [vmem:[#allocation6 + $0x180] sm:$0xff]
    %v341 = vld [vmem:[#allocation6 + $0x188] sm:$0xff]
    %v342 = vld [vmem:[#allocation6 + $0x190] sm:$0xff]
    %v343 = vld [vmem:[#allocation6 + $0x198] sm:$0xff]
    %v344 = vld [vmem:[#allocation6 + $0x1a0] sm:$0xff]
    %v345 = vld [vmem:[#allocation6 + $0x1a8] sm:$0xff]
    %v346 = vld [vmem:[#allocation6 + $0x1b0] sm:$0xff]
    %v347 = vld [vmem:[#allocation6 + $0x1b8] sm:$0xff]
    %v348 = vld [vmem:[#allocation6 + $0x1c0] sm:$0xff]
    %v349 = vld [vmem:[#allocation6 + $0x1c8] sm:$0xff]
    %v350 = vld [vmem:[#allocation6 + $0x1d0] sm:$0xff]
    %v351 = vld [vmem:[#allocation6 + $0x1d8] sm:$0xff]
    %v352 = vld [vmem:[#allocation6 + $0x1e0] sm:$0xff]
    %v353 = vld [vmem:[#allocation6 + $0x1e8] sm:$0xff]
    %v354 = vld [vmem:[#allocation6 + $0x1f0] sm:$0xff]
    %v355 = vld [vmem:[#allocation6 + $0x1f8] sm:$0xff]
    %v356 = vld [vmem:[#allocation6 + $0x200] sm:$0xff]
    %v357 = vld [vmem:[#allocation6 + $0x208] sm:$0xff]
    %v358 = vld [vmem:[#allocation6 + $0x210] sm:$0xff]
    %v359 = vld [vmem:[#allocation6 + $0x218] sm:$0xff]
    %v360 = vld [vmem:[#allocation6 + $0x220] sm:$0xff]
    %v361 = vld [vmem:[#allocation6 + $0x228] sm:$0xff]
    %v362 = vld [vmem:[#allocation6 + $0x230] sm:$0xff]
    %v363 = vld [vmem:[#allocation6 + $0x238] sm:$0xff]
    %v364 = vld [vmem:[#allocation6 + $0x240] sm:$0xff]
    %v365 = vld [vmem:[#allocation6 + $0x248] sm:$0xff]
    %v366 = vld [vmem:[#allocation6 + $0x250] sm:$0xff]
    %v367 = vld [vmem:[#allocation6 + $0x258] sm:$0xff]
    %v368 = vld [vmem:[#allocation6 + $0x260] sm:$0xff]
    %v369 = vld [vmem:[#allocation6 + $0x268] sm:$0xff]
    %v370 = vld [vmem:[#allocation6 + $0x270] sm:$0xff]
    %v371 = vld [vmem:[#allocation6 + $0x278] sm:$0xff]
    %v372 = vld [vmem:[#allocation6 + $0x280] sm:$0xff]
    %v373 = vld [vmem:[#allocation6 + $0x288] sm:$0xff]
    %v374 = vld [vmem:[#allocation6 + $0x290] sm:$0xff]
    %v375 = vld [vmem:[#allocation6 + $0x298] sm:$0xff]
    %v376 = vld [vmem:[#allocation6 + $0x2a0] sm:$0xff]
    %v377 = vld [vmem:[#allocation6 + $0x2a8] sm:$0xff]
    %v378 = vld [vmem:[#allocation6 + $0x2b0] sm:$0xff]
    %v379 = vld [vmem:[#allocation6 + $0x2b8] sm:$0xff]
    %v380 = vld [vmem:[#allocation6 + $0x2c0] sm:$0xff]
    %v381 = vld [vmem:[#allocation6 + $0x2c8] sm:$0xff]
    %v382 = vld [vmem:[#allocation6 + $0x2d0] sm:$0xff]
    %v383 = vld [vmem:[#allocation6 + $0x2d8] sm:$0xff]
    %v384 = vld [vmem:[#allocation6 + $0x2e0] sm:$0xff]
    %v385 = vld [vmem:[#allocation6 + $0x2e8] sm:$0xff]
    %v386 = vld [vmem:[#allocation6 + $0x2f0] sm:$0xff]
    %v387 = vld [vmem:[#allocation6 + $0x2f8] sm:$0xff]
    %v388 = vld [vmem:[#allocation6 + $0x300] sm:$0xff]
    %v389 = vld [vmem:[#allocation6 + $0x308] sm:$0xff]
    %v390 = vld [vmem:[#allocation6 + $0x310] sm:$0xff]
    %v391 = vld [vmem:[#allocation6 + $0x318] sm:$0xff]
    %v392 = vld [vmem:[#allocation6 + $0x320] sm:$0xff]
    %v393 = vld [vmem:[#allocation6 + $0x328] sm:$0xff]
    %v394 = vld [vmem:[#allocation6 + $0x330] sm:$0xff]
    %v395 = vld [vmem:[#allocation6 + $0x338] sm:$0xff]
    %v396 = vld [vmem:[#allocation6 + $0x340] sm:$0xff]
    %v397 = vld [vmem:[#allocation6 + $0x348] sm:$0xff]
    %v398 = vld [vmem:[#allocation6 + $0x350] sm:$0xff]
    %v399 = vld [vmem:[#allocation6 + $0x358] sm:$0xff]
    %v400 = vld [vmem:[#allocation6 + $0x360] sm:$0xff]
    %v401 = vld [vmem:[#allocation6 + $0x368] sm:$0xff]
    %v402 = vld [vmem:[#allocation6 + $0x370] sm:$0xff]
    %v403 = vld [vmem:[#allocation6 + $0x378] sm:$0xff]
    %v404 = vld [vmem:[#allocation6 + $0x380] sm:$0xff]
    %v405 = vld [vmem:[#allocation6 + $0x388] sm:$0xff]
    %v406 = vld [vmem:[#allocation6 + $0x390] sm:$0xff]
    %v407 = vld [vmem:[#allocation6 + $0x398] sm:$0xff]
    %v408 = vld [vmem:[#allocation6 + $0x3a0] sm:$0xff]
    %v409 = vld [vmem:[#allocation6 + $0x3a8] sm:$0xff]
    %v410 = vld [vmem:[#allocation6 + $0x3b0] sm:$0xff]
    %v411 = vld [vmem:[#allocation6 + $0x3b8] sm:$0xff]
    %v412 = vld [vmem:[#allocation6 + $0x3c0] sm:$0xff]
    %v413 = vld [vmem:[#allocation6 + $0x3c8] sm:$0xff]
    %v414 = vld [vmem:[#allocation6 + $0x3d0] sm:$0xff]
    %v415 = vld [vmem:[#allocation6 + $0x3d8] sm:$0xff]
    %v416 = vld [vmem:[#allocation6 + $0x3e0] sm:$0xff]
    %v417 = vld [vmem:[#allocation6 + $0x3e8] sm:$0xff]
    %v418 = vld [vmem:[#allocation6 + $0x3f0] sm:$0xff]
    %v419 = vld [vmem:[#allocation6 + $0x3f8] sm:$0xff]
    %v420 = vld [vmem:[%s6] sm:$0xff]
    %v422 = vlaneseq
    %v423 = vshrl.u32 %v422, 7
    %v424 = vsub.s32 0, %v423
    %v425 = vrot.slane %v420, %v424
    %v426 = vlaneseq
    %v427 = vshrl.u32 %v426, 7
    %v428 = vsub.s32 1, %v427
    %v429 = vrot.slane %v420, %v428
    %v430 = vlaneseq
    %v431 = vshrl.u32 %v430, 7
    %v432 = vsub.s32 2, %v431
    %v433 = vrot.slane %v420, %v432
    %v434 = vlaneseq
    %v435 = vshrl.u32 %v434, 7
    %v436 = vsub.s32 3, %v435
    %v437 = vrot.slane %v420, %v436
    %v438 = vlaneseq
    %v439 = vshrl.u32 %v438, 7
    %v440 = vsub.s32 4, %v439
    %v441 = vrot.slane %v420, %v440
    %v442 = vlaneseq
    %v443 = vshrl.u32 %v442, 7
    %v444 = vsub.s32 5, %v443
    %v445 = vrot.slane %v420, %v444
    %v446 = vlaneseq
    %v447 = vshrl.u32 %v446, 7
    %v448 = vsub.s32 6, %v447
    %v449 = vrot.slane %v420, %v448
    %v450 = vlaneseq
    %v451 = vshrl.u32 %v450, 7
    %v452 = vsub.s32 7, %v451
    %v453 = vrot.slane %v420, %v452
    %462 = vmatprep.subr.mxu0 %v293
    %463 = vmatpush1.msra.mxu0 %v292
    %464 = vmatprep.subr.mxu0 %v301
    %465 = vmatpush1.msra.mxu0 %v300
    %466 = vmatprep.subr.mxu0 %v309
    %467 = vmatpush1.msra.mxu0 %v308
    %468 = vmatprep.subr.mxu0 %v317
    %469 = vmatpush1.msra.mxu0 %v316
    %470 = vmatprep.subr.mxu0 %v325
    %471 = vmatpush1.msra.mxu0 %v324
    %472 = vmatprep.subr.mxu0 %v333
    %473 = vmatpush1.msra.mxu0 %v332
    %474 = vmatprep.subr.mxu0 %v341
    %475 = vmatpush1.msra.mxu0 %v340
    %476 = vmatprep.subr.mxu0 %v349
    %477 = vmatpush1.msra.mxu0 %v348
    %478 = vmatprep.subr.mxu0 %v357
    %479 = vmatpush1.msra.mxu0 %v356
    %480 = vmatprep.subr.mxu0 %v365
    %481 = vmatpush1.msra.mxu0 %v364
    %482 = vmatprep.subr.mxu0 %v373
    %483 = vmatpush1.msra.mxu0 %v372
    %484 = vmatprep.subr.mxu0 %v381
    %485 = vmatpush1.msra.mxu0 %v380
    %486 = vmatprep.subr.mxu0 %v389
    %487 = vmatpush1.msra.mxu0 %v388
    %488 = vmatprep.subr.mxu0 %v397
    %489 = vmatpush1.msra.mxu0 %v396
    %490 = vmatprep.subr.mxu0 %v405
    %491 = vmatpush1.msra.mxu0 %v404
    %492 = vmatprep.subr.mxu0 %v413
    %493 = vmatpush1.msra.mxu0 %v412
    %494 = vmatprep.subr.mxu0 0.0
    %495 = vmatpush1.msra.mxu0 0.0
    %496 = vmatprep.subr.mxu0 0.0
    %497 = vmatpush1.msra.mxu0 0.0
    %498 = vmatprep.subr.mxu0 0.0
    %499 = vmatpush1.msra.mxu0 0.0
    %500 = vmatprep.subr.mxu0 0.0
    %501 = vmatpush1.msra.mxu0 0.0
    %502 = vmatprep.subr.mxu0 0.0
    %503 = vmatpush1.msra.mxu0 0.0
    %504 = vmatprep.subr.mxu0 0.0
    %505 = vmatpush1.msra.mxu0 0.0
    %506 = vmatprep.subr.mxu0 0.0
    %507 = vmatpush1.msra.mxu0 0.0
    %508 = vmatprep.subr.mxu0 0.0
    %509 = vmatpush1.msra.mxu0 0.0
    %510 = vmatprep.subr.mxu0 0.0
    %511 = vmatpush1.msra.mxu0 0.0
    %512 = vmatprep.subr.mxu0 0.0
    %513 = vmatpush1.msra.mxu0 0.0
    %514 = vmatprep.subr.mxu0 0.0
    %515 = vmatpush1.msra.mxu0 0.0
    %516 = vmatprep.subr.mxu0 0.0
    %517 = vmatpush1.msra.mxu0 0.0
    %518 = vmatprep.subr.mxu0 0.0
    %519 = vmatpush1.msra.mxu0 0.0
    %520 = vmatprep.subr.mxu0 0.0
    %521 = vmatpush1.msra.mxu0 0.0
    %522 = vmatprep.subr.mxu0 0.0
    %523 = vmatpush1.msra.mxu0 0.0
    %524 = vmatprep.subr.mxu0 0.0
    %525 = vmatpush1.msra.mxu0 0.0
    %526 = vmatprep.mubr.f32.mxu0 0.0
    %527 = vmatmul.mubr.f32.gmra.mrb[0].mxu0 %v288
    %v528 = vpop.f32.mrb[0].mxu0
    %v529 = vadd.f32 %v425, %v528
    %v530 = vpop.f32.mrb[0].mxu0
    %v531 = vadd.f32 %v429, %v530
    %532 = vmatprep.mubr.f32.mxu0 0.0
    %533 = vmatmul.mubr.f32.gmra.mrb[0].mxu0 %v289
    %v534 = vpop.f32.mrb[0].mxu0
    %v535 = vadd.f32 %v425, %v534
    %v536 = vpop.f32.mrb[0].mxu0
    %v537 = vadd.f32 %v429, %v536
    %538 = vmatprep.mubr.f32.mxu0 0.0
    %539 = vmatmul.mubr.f32.gmra.mrb[0].mxu0 %v290
    %v540 = vpop.f32.mrb[0].mxu0
    %v541 = vadd.f32 %v425, %v540
    %v542 = vpop.f32.mrb[0].mxu0
    %v543 = vadd.f32 %v429, %v542
    %544 = vmatprep.mubr.f32.mxu0 0.0
    %545 = vmatmul.mubr.f32.gmra.mrb[0].mxu0 %v291
    %v546 = vpop.f32.mrb[0].mxu0
    %v547 = vadd.f32 %v425, %v546
    %v548 = vpop.f32.mrb[0].mxu0
    %v549 = vadd.f32 %v429, %v548
    %550 = vdwg.mxu0
    %551 = vmatprep.subr.mxu0 %v295
    %552 = vmatpush1.msra.mxu0 %v294
    %553 = vmatprep.subr.mxu0 %v303
    %554 = vmatpush1.msra.mxu0 %v302
    %555 = vmatprep.subr.mxu0 %v311
    %556 = vmatpush1.msra.mxu0 %v310
    %557 = vmatprep.subr.mxu0 %v319
    %558 = vmatpush1.msra.mxu0 %v318
    %559 = vmatprep.subr.mxu0 %v327
    %560 = vmatpush1.msra.mxu0 %v326
    %561 = vmatprep.subr.mxu0 %v335
    %562 = vmatpush1.msra.mxu0 %v334
    %563 = vmatprep.subr.mxu0 %v343
    %564 = vmatpush1.msra.mxu0 %v342
    %565 = vmatprep.subr.mxu0 %v351
    %566 = vmatpush1.msra.mxu0 %v350
    %567 = vmatprep.subr.mxu0 %v359
    %568 = vmatpush1.msra.mxu0 %v358
    %569 = vmatprep.subr.mxu0 %v367
    %570 = vmatpush1.msra.mxu0 %v366
    %571 = vmatprep.subr.mxu0 %v375
    %572 = vmatpush1.msra.mxu0 %v374
    %573 = vmatprep.subr.mxu0 %v383
    %574 = vmatpush1.msra.mxu0 %v382
    %575 = vmatprep.subr.mxu0 %v391
    %576 = vmatpush1.msra.mxu0 %v390
    %577 = vmatprep.subr.mxu0 %v399
    %578 = vmatpush1.msra.mxu0 %v398
    %579 = vmatprep.subr.mxu0 %v407
    %580 = vmatpush1.msra.mxu0 %v406
    %581 = vmatprep.subr.mxu0 %v415
    %582 = vmatpush1.msra.mxu0 %v414
    %583 = vmatprep.subr.mxu0 0.0
    %584 = vmatpush1.msra.mxu0 0.0
    %585 = vmatprep.subr.mxu0 0.0
    %586 = vmatpush1.msra.mxu0 0.0
    %587 = vmatprep.subr.mxu0 0.0
    %588 = vmatpush1.msra.mxu0 0.0
    %589 = vmatprep.subr.mxu0 0.0
    %590 = vmatpush1.msra.mxu0 0.0
    %591 = vmatprep.subr.mxu0 0.0
    %592 = vmatpush1.msra.mxu0 0.0
    %593 = vmatprep.subr.mxu0 0.0
    %594 = vmatpush1.msra.mxu0 0.0
    %595 = vmatprep.subr.mxu0 0.0
    %596 = vmatpush1.msra.mxu0 0.0
    %597 = vmatprep.subr.mxu0 0.0
    %598 = vmatpush1.msra.mxu0 0.0
    %599 = vmatprep.subr.mxu0 0.0
    %600 = vmatpush1.msra.mxu0 0.0
    %601 = vmatprep.subr.mxu0 0.0
    %602 = vmatpush1.msra.mxu0 0.0
    %603 = vmatprep.subr.mxu0 0.0
    %604 = vmatpush1.msra.mxu0 0.0
    %605 = vmatprep.subr.mxu0 0.0
    %606 = vmatpush1.msra.mxu0 0.0
    %607 = vmatprep.subr.mxu0 0.0
    %608 = vmatpush1.msra.mxu0 0.0
    %609 = vmatprep.subr.mxu0 0.0
    %610 = vmatpush1.msra.mxu0 0.0
    %611 = vmatprep.subr.mxu0 0.0
    %612 = vmatpush1.msra.mxu0 0.0
    %613 = vmatprep.subr.mxu0 0.0
    %614 = vmatpush1.msra.mxu0 0.0
    %615 = vmatprep.mubr.f32.mxu0 0.0
    %616 = vmatmul.mubr.f32.gmra.mrb[0].mxu0 %v288
    %v617 = vpop.f32.mrb[0].mxu0
    %v618 = vadd.f32 %v433, %v617
    %v619 = vpop.f32.mrb[0].mxu0
    %v620 = vadd.f32 %v437, %v619
    %621 = vmatprep.mubr.f32.mxu0 0.0
    %622 = vmatmul.mubr.f32.gmra.mrb[0].mxu0 %v289
    %v623 = vpop.f32.mrb[0].mxu0
    %v624 = vadd.f32 %v433, %v623
    %v625 = vpop.f32.mrb[0].mxu0
    %v626 = vadd.f32 %v437, %v625
    %627 = vmatprep.mubr.f32.mxu0 0.0
    %628 = vmatmul.mubr.f32.gmra.mrb[0].mxu0 %v290
    %v629 = vpop.f32.mrb[0].mxu0
    %v630 = vadd.f32 %v433, %v629
    %v631 = vpop.f32.mrb[0].mxu0
    %v632 = vadd.f32 %v437, %v631
    %633 = vmatprep.mubr.f32.mxu0 0.0
    %634 = vmatmul.mubr.f32.gmra.mrb[0].mxu0 %v291
    %v635 = vpop.f32.mrb[0].mxu0
    %v636 = vadd.f32 %v433, %v635
    %v637 = vpop.f32.mrb[0].mxu0
    %v638 = vadd.f32 %v437, %v637
    %639 = vdwg.mxu0
    %640 = vmatprep.subr.mxu0 %v297
    %641 = vmatpush1.msra.mxu0 %v296
    %642 = vmatprep.subr.mxu0 %v305
    %643 = vmatpush1.msra.mxu0 %v304
    %644 = vmatprep.subr.mxu0 %v313
    %645 = vmatpush1.msra.mxu0 %v312
    %646 = vmatprep.subr.mxu0 %v321
    %647 = vmatpush1.msra.mxu0 %v320
    %648 = vmatprep.subr.mxu0 %v329
    %649 = vmatpush1.msra.mxu0 %v328
    %650 = vmatprep.subr.mxu0 %v337
    %651 = vmatpush1.msra.mxu0 %v336
    %652 = vmatprep.subr.mxu0 %v345
    %653 = vmatpush1.msra.mxu0 %v344
    %654 = vmatprep.subr.mxu0 %v353
    %655 = vmatpush1.msra.mxu0 %v352
    %656 = vmatprep.subr.mxu0 %v361
    %657 = vmatpush1.msra.mxu0 %v360
    %658 = vmatprep.subr.mxu0 %v369
    %659 = vmatpush1.msra.mxu0 %v368
    %660 = vmatprep.subr.mxu0 %v377
    %661 = vmatpush1.msra.mxu0 %v376
    %662 = vmatprep.subr.mxu0 %v385
    %663 = vmatpush1.msra.mxu0 %v384
    %664 = vmatprep.subr.mxu0 %v393
    %665 = vmatpush1.msra.mxu0 %v392
    %666 = vmatprep.subr.mxu0 %v401
    %667 = vmatpush1.msra.mxu0 %v400
    %668 = vmatprep.subr.mxu0 %v409
    %669 = vmatpush1.msra.mxu0 %v408
    %670 = vmatprep.subr.mxu0 %v417
    %671 = vmatpush1.msra.mxu0 %v416
    %672 = vmatprep.subr.mxu0 0.0
    %673 = vmatpush1.msra.mxu0 0.0
    %674 = vmatprep.subr.mxu0 0.0
    %675 = vmatpush1.msra.mxu0 0.0
    %676 = vmatprep.subr.mxu0 0.0
    %677 = vmatpush1.msra.mxu0 0.0
    %678 = vmatprep.subr.mxu0 0.0
    %679 = vmatpush1.msra.mxu0 0.0
    %680 = vmatprep.subr.mxu0 0.0
    %681 = vmatpush1.msra.mxu0 0.0
    %682 = vmatprep.subr.mxu0 0.0
    %683 = vmatpush1.msra.mxu0 0.0
    %684 = vmatprep.subr.mxu0 0.0
    %685 = vmatpush1.msra.mxu0 0.0
    %686 = vmatprep.subr.mxu0 0.0
    %687 = vmatpush1.msra.mxu0 0.0
    %688 = vmatprep.subr.mxu0 0.0
    %689 = vmatpush1.msra.mxu0 0.0
    %690 = vmatprep.subr.mxu0 0.0
    %691 = vmatpush1.msra.mxu0 0.0
    %692 = vmatprep.subr.mxu0 0.0
    %693 = vmatpush1.msra.mxu0 0.0
    %694 = vmatprep.subr.mxu0 0.0
    %695 = vmatpush1.msra.mxu0 0.0
    %696 = vmatprep.subr.mxu0 0.0
    %697 = vmatpush1.msra.mxu0 0.0
    %698 = vmatprep.subr.mxu0 0.0
    %699 = vmatpush1.msra.mxu0 0.0
    %700 = vmatprep.subr.mxu0 0.0
    %701 = vmatpush1.msra.mxu0 0.0
    %702 = vmatprep.subr.mxu0 0.0
    %703 = vmatpush1.msra.mxu0 0.0
    %704 = vmatprep.mubr.f32.mxu0 0.0
    %705 = vmatmul.mubr.f32.gmra.mrb[0].mxu0 %v288
    %v706 = vpop.f32.mrb[0].mxu0
    %v707 = vadd.f32 %v441, %v706
    %v708 = vpop.f32.mrb[0].mxu0
    %v709 = vadd.f32 %v445, %v708
    %710 = vmatprep.mubr.f32.mxu0 0.0
    %711 = vmatmul.mubr.f32.gmra.mrb[0].mxu0 %v289
    %v712 = vpop.f32.mrb[0].mxu0
    %v713 = vadd.f32 %v441, %v712
    %v714 = vpop.f32.mrb[0].mxu0
    %v715 = vadd.f32 %v445, %v714
    %716 = vmatprep.mubr.f32.mxu0 0.0
    %717 = vmatmul.mubr.f32.gmra.mrb[0].mxu0 %v290
    %v718 = vpop.f32.mrb[0].mxu0
    %v719 = vadd.f32 %v441, %v718
    %v720 = vpop.f32.mrb[0].mxu0
    %v721 = vadd.f32 %v445, %v720
    %722 = vmatprep.mubr.f32.mxu0 0.0
    %723 = vmatmul.mubr.f32.gmra.mrb[0].mxu0 %v291
    %v724 = vpop.f32.mrb[0].mxu0
    %v725 = vadd.f32 %v441, %v724
    %v726 = vpop.f32.mrb[0].mxu0
    %v727 = vadd.f32 %v445, %v726
    %728 = vdwg.mxu0
    %729 = vmatprep.subr.mxu0 %v299
    %730 = vmatpush1.msra.mxu0 %v298
    %731 = vmatprep.subr.mxu0 %v307
    %732 = vmatpush1.msra.mxu0 %v306
    %733 = vmatprep.subr.mxu0 %v315
    %734 = vmatpush1.msra.mxu0 %v314
    %735 = vmatprep.subr.mxu0 %v323
    %736 = vmatpush1.msra.mxu0 %v322
    %737 = vmatprep.subr.mxu0 %v331
    %738 = vmatpush1.msra.mxu0 %v330
    %739 = vmatprep.subr.mxu0 %v339
    %740 = vmatpush1.msra.mxu0 %v338
    %741 = vmatprep.subr.mxu0 %v347
    %742 = vmatpush1.msra.mxu0 %v346
    %743 = vmatprep.subr.mxu0 %v355
    %744 = vmatpush1.msra.mxu0 %v354
    %745 = vmatprep.subr.mxu0 %v363
    %746 = vmatpush1.msra.mxu0 %v362
    %747 = vmatprep.subr.mxu0 %v371
    %748 = vmatpush1.msra.mxu0 %v370
    %749 = vmatprep.subr.mxu0 %v379
    %750 = vmatpush1.msra.mxu0 %v378
    %751 = vmatprep.subr.mxu0 %v387
    %752 = vmatpush1.msra.mxu0 %v386
    %753 = vmatprep.subr.mxu0 %v395
    %754 = vmatpush1.msra.mxu0 %v394
    %755 = vmatprep.subr.mxu0 %v403
    %756 = vmatpush1.msra.mxu0 %v402
    %757 = vmatprep.subr.mxu0 %v411
    %758 = vmatpush1.msra.mxu0 %v410
    %759 = vmatprep.subr.mxu0 %v419
    %760 = vmatpush1.msra.mxu0 %v418
    %761 = vmatprep.subr.mxu0 0.0
    %762 = vmatpush1.msra.mxu0 0.0
    %763 = vmatprep.subr.mxu0 0.0
    %764 = vmatpush1.msra.mxu0 0.0
    %765 = vmatprep.subr.mxu0 0.0
    %766 = vmatpush1.msra.mxu0 0.0
    %767 = vmatprep.subr.mxu0 0.0
    %768 = vmatpush1.msra.mxu0 0.0
    %769 = vmatprep.subr.mxu0 0.0
    %770 = vmatpush1.msra.mxu0 0.0
    %771 = vmatprep.subr.mxu0 0.0
    %772 = vmatpush1.msra.mxu0 0.0
    %773 = vmatprep.subr.mxu0 0.0
    %774 = vmatpush1.msra.mxu0 0.0
    %775 = vmatprep.subr.mxu0 0.0
    %776 = vmatpush1.msra.mxu0 0.0
    %777 = vmatprep.subr.mxu0 0.0
    %778 = vmatpush1.msra.mxu0 0.0
    %779 = vmatprep.subr.mxu0 0.0
    %780 = vmatpush1.msra.mxu0 0.0
    %781 = vmatprep.subr.mxu0 0.0
    %782 = vmatpush1.msra.mxu0 0.0
    %783 = vmatprep.subr.mxu0 0.0
    %784 = vmatpush1.msra.mxu0 0.0
    %785 = vmatprep.subr.mxu0 0.0
    %786 = vmatpush1.msra.mxu0 0.0
    %787 = vmatprep.subr.mxu0 0.0
    %788 = vmatpush1.msra.mxu0 0.0
    %789 = vmatprep.subr.mxu0 0.0
    %790 = vmatpush1.msra.mxu0 0.0
    %791 = vmatprep.subr.mxu0 0.0
    %792 = vmatpush1.msra.mxu0 0.0
    %793 = vmatprep.mubr.f32.mxu0 0.0
    %794 = vmatmul.mubr.f32.gmra.mrb[0].mxu0 %v288
    %v795 = vpop.f32.mrb[0].mxu0
    %v796 = vadd.f32 %v449, %v795
    %v797 = vpop.f32.mrb[0].mxu0
    %v798 = vadd.f32 %v453, %v797
    %799 = vmatprep.mubr.f32.mxu0 0.0
    %800 = vmatmul.mubr.f32.gmra.mrb[0].mxu0 %v289
    %v801 = vpop.f32.mrb[0].mxu0
    %v802 = vadd.f32 %v449, %v801
    %v803 = vpop.f32.mrb[0].mxu0
    %v804 = vadd.f32 %v453, %v803
    %805 = vmatprep.mubr.f32.mxu0 0.0
    %806 = vmatmul.mubr.f32.gmra.mrb[0].mxu0 %v290
    %v807 = vpop.f32.mrb[0].mxu0
    %v808 = vadd.f32 %v449, %v807
    %v809 = vpop.f32.mrb[0].mxu0
    %v810 = vadd.f32 %v453, %v809
    %811 = vmatprep.mubr.f32.mxu0 0.0
    %812 = vmatmul.mubr.f32.gmra.mrb[0].mxu0 %v291
    %v813 = vpop.f32.mrb[0].mxu0
    %v814 = vadd.f32 %v449, %v813
    %v815 = vpop.f32.mrb[0].mxu0
    %v816 = vadd.f32 %v453, %v815
    %817 = vdwg.mxu0
    %v818 = vmax.f32 %v529, 0.0
    %v819 = vmax.f32 %v531, 0.0
    %v820 = vmax.f32 %v618, 0.0
    %v821 = vmax.f32 %v620, 0.0
    %v822 = vmax.f32 %v707, 0.0
    %v823 = vmax.f32 %v709, 0.0
    %v824 = vmax.f32 %v796, 0.0
    %v825 = vmax.f32 %v798, 0.0
    %v826 = vmax.f32 %v535, 0.0
    %v827 = vmax.f32 %v537, 0.0
    %v828 = vmax.f32 %v624, 0.0
    %v829 = vmax.f32 %v626, 0.0
    %v830 = vmax.f32 %v713, 0.0
    %v831 = vmax.f32 %v715, 0.0
    %v832 = vmax.f32 %v802, 0.0
    %v833 = vmax.f32 %v804, 0.0
    %v834 = vmax.f32 %v541, 0.0
    %v835 = vmax.f32 %v543, 0.0
    %v836 = vmax.f32 %v630, 0.0
    %v837 = vmax.f32 %v632, 0.0
    %v838 = vmax.f32 %v719, 0.0
    %v839 = vmax.f32 %v721, 0.0
    %v840 = vmax.f32 %v808, 0.0
    %v841 = vmax.f32 %v810, 0.0
    %v842 = vmax.f32 %v547, 0.0
    %v843 = vmax.f32 %v549, 0.0
    %v844 = vmax.f32 %v636, 0.0
    %v845 = vmax.f32 %v638, 0.0
    %v846 = vmax.f32 %v725, 0.0
    %v847 = vmax.f32 %v727, 0.0
    %v848 = vmax.f32 %v814, 0.0
    %v849 = vmax.f32 %v816, 0.0
    %v850 = vld [vmem:[#allocation2] sm:$0xff]
    %v851 = vld [vmem:[#allocation2 + $0x8] sm:$0xff]
    %v852 = vmax.f32 %v818, %v826
    %v853 = vrot.slane %v852, 4
    %v854 = vmax.f32 %v852, %v853
    %v855 = vrot.slane %v854, 2
    %v856 = vmax.f32 %v854, %v855
    %v857 = vrot.slane %v856, 1
    %v858 = vmax.f32 %v856, %v857
    %v859 = vmax.f32 %v819, %v827
    %v860 = vrot.slane %v859, 4
    %v861 = vmax.f32 %v859, %v860
    %v862 = vrot.slane %v861, 2
    %v863 = vmax.f32 %v861, %v862
    %v864 = vrot.slane %v863, 1
    %v865 = vmax.f32 %v863, %v864
    %v866 = vmax.f32 %v820, %v828
    %v867 = vrot.slane %v866, 4
    %v868 = vmax.f32 %v866, %v867
    %v869 = vrot.slane %v868, 2
    %v870 = vmax.f32 %v868, %v869
    %v871 = vrot.slane %v870, 1
    %v872 = vmax.f32 %v870, %v871
    %v873 = vmax.f32 %v821, %v829
    %v874 = vrot.slane %v873, 4
    %v875 = vmax.f32 %v873, %v874
    %v876 = vrot.slane %v875, 2
    %v877 = vmax.f32 %v875, %v876
    %v878 = vrot.slane %v877, 1
    %v879 = vmax.f32 %v877, %v878
    %v880 = vmax.f32 %v822, %v830
    %v881 = vrot.slane %v880, 4
    %v882 = vmax.f32 %v880, %v881
    %v883 = vrot.slane %v882, 2
    %v884 = vmax.f32 %v882, %v883
    %v885 = vrot.slane %v884, 1
    %v886 = vmax.f32 %v884, %v885
    %v887 = vmax.f32 %v823, %v831
    %v888 = vrot.slane %v887, 4
    %v889 = vmax.f32 %v887, %v888
    %v890 = vrot.slane %v889, 2
    %v891 = vmax.f32 %v889, %v890
    %v892 = vrot.slane %v891, 1
    %v893 = vmax.f32 %v891, %v892
    %v894 = vmax.f32 %v824, %v832
    %v895 = vrot.slane %v894, 4
    %v896 = vmax.f32 %v894, %v895
    %v897 = vrot.slane %v896, 2
    %v898 = vmax.f32 %v896, %v897
    %v899 = vrot.slane %v898, 1
    %v900 = vmax.f32 %v898, %v899
    %v901 = vmax.f32 %v825, %v833
    %v902 = vrot.slane %v901, 4
    %v903 = vmax.f32 %v901, %v902
    %v904 = vrot.slane %v903, 2
    %v905 = vmax.f32 %v903, %v904
    %v906 = vrot.slane %v905, 1
    %v907 = vmax.f32 %v905, %v906
    %v908 = vmax.f32 %v834, %v842
    %v909 = vrot.slane %v908, 4
    %v910 = vmax.f32 %v908, %v909
    %v911 = vrot.slane %v910, 2
    %v912 = vmax.f32 %v910, %v911
    %v913 = vrot.slane %v912, 1
    %v914 = vmax.f32 %v912, %v913
    %v915 = vmax.f32 %v835, %v843
    %v916 = vrot.slane %v915, 4
    %v917 = vmax.f32 %v915, %v916
    %v918 = vrot.slane %v917, 2
    %v919 = vmax.f32 %v917, %v918
    %v920 = vrot.slane %v919, 1
    %v921 = vmax.f32 %v919, %v920
    %v922 = vmax.f32 %v836, %v844
    %v923 = vrot.slane %v922, 4
    %v924 = vmax.f32 %v922, %v923
    %v925 = vrot.slane %v924, 2
    %v926 = vmax.f32 %v924, %v925
    %v927 = vrot.slane %v926, 1
    %v928 = vmax.f32 %v926, %v927
    %v929 = vmax.f32 %v837, %v845
    %v930 = vrot.slane %v929, 4
    %v931 = vmax.f32 %v929, %v930
    %v932 = vrot.slane %v931, 2
    %v933 = vmax.f32 %v931, %v932
    %v934 = vrot.slane %v933, 1
    %v935 = vmax.f32 %v933, %v934
    %v936 = vmax.f32 %v838, %v846
    %v937 = vrot.slane %v936, 4
    %v938 = vmax.f32 %v936, %v937
    %v939 = vrot.slane %v938, 2
    %v940 = vmax.f32 %v938, %v939
    %v941 = vrot.slane %v940, 1
    %v942 = vmax.f32 %v940, %v941
    %v943 = vmax.f32 %v839, %v847
    %v944 = vrot.slane %v943, 4
    %v945 = vmax.f32 %v943, %v944
    %v946 = vrot.slane %v945, 2
    %v947 = vmax.f32 %v945, %v946
    %v948 = vrot.slane %v947, 1
    %v949 = vmax.f32 %v947, %v948
    %v950 = vmax.f32 %v840, %v848
    %v951 = vrot.slane %v950, 4
    %v952 = vmax.f32 %v950, %v951
    %v953 = vrot.slane %v952, 2
    %v954 = vmax.f32 %v952, %v953
    %v955 = vrot.slane %v954, 1
    %v956 = vmax.f32 %v954, %v955
    %v957 = vmax.f32 %v841, %v849
    %v958 = vrot.slane %v957, 4
    %v959 = vmax.f32 %v957, %v958
    %v960 = vrot.slane %v959, 2
    %v961 = vmax.f32 %v959, %v960
    %v962 = vrot.slane %v961, 1
    %v963 = vmax.f32 %v961, %v962
    %v980 = vcombine.low %v858, %v865
    %v981 = vcombine.low %v872, %v879
    %v983 = vunpack.c.l.s4 1983009808
    %v984 = vunpack.c.0.s8 %v983
    %v985 = vlaneseq
    %v986 = vshrl.u32 %v985, 7
    %v987 = vsub.s32 %v984, %v986
    %v988 = vrot.slane %v980, %v987
    %v990 = vunpack.c.l.s4 1983009808
    %v991 = vunpack.c.0.s8 %v990
    %v992 = vlaneseq
    %v993 = vshrl.u32 %v992, 7
    %v994 = vsub.s32 %v991, %v993
    %v995 = vrot.slane %v981, %v994
    %v996 = vcombine.low %v988, %v995
    %v997 = vcombine.low %v886, %v893
    %v998 = vcombine.low %v900, %v907
    %v1000 = vunpack.c.l.s4 1983009808
    %v1001 = vunpack.c.0.s8 %v1000
    %v1002 = vlaneseq
    %v1003 = vshrl.u32 %v1002, 7
    %v1004 = vsub.s32 %v1001, %v1003
    %v1005 = vrot.slane %v997, %v1004
    %v1007 = vunpack.c.l.s4 1983009808
    %v1008 = vunpack.c.0.s8 %v1007
    %v1009 = vlaneseq
    %v1010 = vshrl.u32 %v1009, 7
    %v1011 = vsub.s32 %v1008, %v1010
    %v1012 = vrot.slane %v998, %v1011
    %v1013 = vcombine.low %v1005, %v1012
    %v1014 = vcombine.low %v914, %v921
    %v1015 = vcombine.low %v928, %v935
    %v1017 = vunpack.c.l.s4 1983009808
    %v1018 = vunpack.c.0.s8 %v1017
    %v1019 = vlaneseq
    %v1020 = vshrl.u32 %v1019, 7
    %v1021 = vsub.s32 %v1018, %v1020
    %v1022 = vrot.slane %v1014, %v1021
    %v1024 = vunpack.c.l.s4 1983009808
    %v1025 = vunpack.c.0.s8 %v1024
    %v1026 = vlaneseq
    %v1027 = vshrl.u32 %v1026, 7
    %v1028 = vsub.s32 %v1025, %v1027
    %v1029 = vrot.slane %v1015, %v1028
    %v1030 = vcombine.low %v1022, %v1029
    %v1031 = vcombine.low %v942, %v949
    %v1032 = vcombine.low %v956, %v963
    %v1034 = vunpack.c.l.s4 1983009808
    %v1035 = vunpack.c.0.s8 %v1034
    %v1036 = vlaneseq
    %v1037 = vshrl.u32 %v1036, 7
    %v1038 = vsub.s32 %v1035, %v1037
    %v1039 = vrot.slane %v1031, %v1038
    %v1041 = vunpack.c.l.s4 1983009808
    %v1042 = vunpack.c.0.s8 %v1041
    %v1043 = vlaneseq
    %v1044 = vshrl.u32 %v1043, 7
    %v1045 = vsub.s32 %v1042, %v1044
    %v1046 = vrot.slane %v1032, %v1045
    %v1047 = vcombine.low %v1039, %v1046
    %vm1048 = vcmask 1044484
    %v1049 = vsel %vm1048, %v996, %v996
    %vm1050 = vcmask 1046534
    %v1051 = vsel %vm1050, %v996, %v1049
    %v1052 = vrot.slane %v1030, 7
    %vm1053 = vcmask 1041409
    %v1054 = vsel %vm1053, %v1052, %v1051
    %vm1055 = vcmask 1043459
    %v1056 = vsel %vm1055, %v1052, %v1054
    %vm1057 = vcmask 1045509
    %v1058 = vsel %vm1057, %v1052, %v1056
    %vm1059 = vcmask 1047559
    %v1060 = vsel %vm1059, %v1052, %v1058
    %v1061 = vsel %vm1048, %v1013, %v1013
    %v1062 = vsel %vm1050, %v1013, %v1061
    %v1063 = vrot.slane %v1047, 7
    %v1064 = vsel %vm1053, %v1063, %v1062
    %v1065 = vsel %vm1055, %v1063, %v1064
    %v1066 = vsel %vm1057, %v1063, %v1065
    %v1067 = vsel %vm1059, %v1063, %v1066
    %v1070 = vmax.f32 %v850, %v1060
    %v1071 = vmax.f32 %v851, %v1067
    %1072 = vst [vmem:[#allocation2] sm:$0xff] %v1070
    %1073 = vst [vmem:[#allocation2 + $0x8] sm:$0xff] %v1071
    // Predicated region
    $region42: #{tpu_custom_call.1} parent=1 // pred_check
      %p1074 = pneg %p55
    $region43: #{tpu_custom_call.1} parent=1 // pred_check_branch
      %1076 = sbr.rel (%p1074) target = $region45
    $region44: #{tpu_custom_call.1} parent=1 // pred_region
      %v1077 = vld [vmem:[#allocation2] sm:$0xff]
      %v1078 = vld [vmem:[#allocation2 + $0x8] sm:$0xff]
      %1079 = vst [vmem:[#allocation8] sm:$0xff] %v1077
      %1080 = vst [vmem:[#allocation8 + $0x8] sm:$0xff] %v1078
    $region45: #{tpu_custom_call.1} parent=1 // pred_fallthru
      _
    // Predicated region
    $region46: #{tpu_custom_call.1} parent=1 // pred_check
      _
    $region47: #{tpu_custom_call.1} parent=1 // pred_check_branch
      %1082 = sbr.rel (0) target = $region49
    $region48: #{tpu_custom_call.1} parent=1 // pred_region
      %s1084 = ssub.s32 256, 256
      %1085 = vsyncadd [#allocation5], %s1084
      %s1087 = sshll.u32 [#allocation8], 4
      %s1088 = int_to_ptr.vmem [resolvable:$true] %s1087
      %1090 = dma.vmem_to_hbm [thread:$0]  %s1088, 256, %s7, [#allocation5]
    $region49: #{tpu_custom_call.1} parent=1 // pred_fallthru
      _
    // Predicated region
    $region50: #{tpu_custom_call.1} parent=1 // pred_check
      _
    $region51: #{tpu_custom_call.1} parent=1 // pred_check_branch
      %1092 = sbr.rel (0) target = $region53
    $region52: #{tpu_custom_call.1} parent=1 // pred_region
      %1093 = dma.done [#allocation5], 256
    $region53: #{tpu_custom_call.1} parent=1 // pred_fallthru
      _
    %1094 = vsyncpa [#allocation4], 1
    %1095 = vsyncpa [#allocation7], 1
    %1096 = vsyncpa [#allocation5], 1

</llo_original>
